<compile_context>
chip_gen: v6e
topology: v6e:2x2x1
jax: 0.10.0
libtpu: 0.0.40
codegen_flags: <defaults>
</compile_context>

<pallas_src>
import functools

import numpy as np
import jax
import jax.numpy as jnp
from jax.experimental import pallas as pl
from jax.experimental.pallas import tpu as pltpu


# ---------------------------------------------------------------------------
# Kernels
# ---------------------------------------------------------------------------

def xw_affine_kernel(h_ref, scale_ref, shift_ref, w_ref, out_ref):
    """out = (h * scale + shift) @ w   (bf16 MXU, f32 accumulate).

    scale/shift implement a fused BatchNorm-apply (scale = gamma/std,
    shift = beta - mu*gamma/std); identity (1, 0) for a plain XW.
    """
    h = h_ref[...].astype(jnp.float32) * scale_ref[...] + shift_ref[...]
    out_ref[...] = jnp.dot(h.astype(jnp.bfloat16), w_ref[...],
                           preferred_element_type=jnp.float32
                           ).astype(out_ref.dtype)


def propagate_kernel(kstart_ref, n_ref, adj_ref, hw_ref, b_ref,
                     out_ref, stats_ref, acc_ref, *, hw_resident, tk):
    """out_tile = relu(sum_k adj[i, ks[i]+k] @ hw[ks[i]+k] + b), row-masked.

    kstart_ref (SMEM) gives, per row tile, the first adjacency column block
    that can be non-zero (block-diagonal batched graph).  n_ref (SMEM) is the
    real node count; the padding mask is an in-kernel iota (no mask operand).

    The epilogue additionally writes per-row-tile partial BN statistics
    (rows 0/1 of an (8, hout) block: sum and sum-of-squares) so the following
    BatchNorm never re-reads the activation from HBM.  One stats block per
    row tile -> race-free under the 'parallel' row axis.
    """
    i = pl.program_id(0)
    k = pl.program_id(1)

    @pl.when(k == 0)
    def _():
        acc_ref[...] = jnp.zeros_like(acc_ref)

    if hw_resident:
        # hw lives fully in VMEM; slice the active column block in-kernel.
        col = pl.multiple_of((kstart_ref[i] + k) * tk, tk)
        hw = hw_ref[pl.ds(col, tk), :]
    else:
        hw = hw_ref[...]

    acc_ref[...] += jnp.dot(adj_ref[...], hw,
                            preferred_element_type=jnp.float32)

    @pl.when(k == pl.num_programs(1) - 1)
    def _():
        tm = out_ref.shape[0]
        h = jnp.maximum(acc_ref[...] + b_ref[...], 0.0)
        row = jax.lax.broadcasted_iota(jnp.int32, h.shape, 0) + i * tm
        h = jnp.where(row < n_ref[0], h, 0.0)          # zero the padded rows
        out_ref[...] = h.astype(out_ref.dtype)
        s = jnp.sum(h, axis=0, keepdims=True)
        ss = jnp.sum(h * h, axis=0, keepdims=True)
        stats_ref[...] = jnp.concatenate(
            [s, ss, jnp.zeros((6, h.shape[1]), jnp.float32)], axis=0)


def pool_fc_kernel(pool_ref, h_ref, scale_ref, shift_ref, wfc_ref, bfc_ref,
                   out_ref, acc_ref):
    """out = (pool @ (h * scale + shift)) @ wfc + bfc.

    BatchNorm2-apply + global_mean_pool + Linear fused; tiled over the node
    axis ('arbitrary') with an f32 (gpad, hout) accumulator in VMEM.
    """
    k = pl.program_id(0)

    @pl.when(k == 0)
    def _():
        acc_ref[...] = jnp.zeros_like(acc_ref)

    h = h_ref[...].astype(jnp.float32) * scale_ref[...] + shift_ref[...]
    acc_ref[...] += jnp.dot(pool_ref[...], h.astype(jnp.bfloat16),
                            preferred_element_type=jnp.float32)

    @pl.when(k == pl.num_programs(0) - 1)
    def _():
        out_ref[...] = (jnp.dot(acc_ref[...], wfc_ref[...],
                                preferred_element_type=jnp.float32)
                        + bfc_ref[...])


# ---------------------------------------------------------------------------
# Pallas-call wrappers
# ---------------------------------------------------------------------------

def _vmem_limit_bytes():
    """Generation-aware scoped-VMEM budget (v5e/v6e: 128 MiB, v7x: 64 MiB)."""
    cap = 64 * 1024 * 1024
    try:
        info = pltpu.get_tpu_info()
        cap = int(getattr(info, "vmem_capacity_bytes", cap))
    except Exception:
        pass
    # ~25% headroom for compiler scratch; never below 16 MiB, never silly-big.
    return max(16 * 1024 * 1024, min(cap * 3 // 4, 112 * 1024 * 1024))


def _xw_affine(h, scale, shift, w, tm, vmem_limit):
    npad, hin = h.shape
    hout = w.shape[1]
    m_tiles = npad // tm
    return pl.pallas_call(
        xw_affine_kernel,
        out_shape=jax.ShapeDtypeStruct((npad, hout), jnp.bfloat16),
        grid=(m_tiles,),
        in_specs=[pl.BlockSpec((tm, hin), lambda i: (i, 0)),
                  pl.BlockSpec((1, hin), lambda i: (0, 0)),
                  pl.BlockSpec((1, hin), lambda i: (0, 0)),
                  pl.BlockSpec((hin, hout), lambda i: (0, 0))],
        out_specs=pl.BlockSpec((tm, hout), lambda i: (i, 0)),
        compiler_params=pltpu.CompilerParams(
            dimension_semantics=("parallel",),
            vmem_limit_bytes=vmem_limit),
    )(h, scale, shift, w)


def _propagate(adj, hw, b, n_arr, k_start, kmax, tm, tk, vmem_limit,
               hw_resident):
    npad = adj.shape[0]
    hout = hw.shape[1]
    m_tiles = npad // tm

    if hw_resident:
        hw_spec = pl.BlockSpec((npad, hout), lambda i, k, ks, nn: (0, 0))
        hw_bytes = npad * hout * 2
    else:
        hw_spec = pl.BlockSpec((tk, hout), lambda i, k, ks, nn: (ks[i] + k, 0))
        hw_bytes = m_tiles * kmax * tk * hout * 2

    flops = 2 * m_tiles * kmax * tm * tk * hout
    bytes_accessed = (m_tiles * kmax * tm * tk * 2       # bf16 adjacency
                      + hw_bytes                          # bf16 hw
                      + npad * hout * 2                   # bf16 output
                      + m_tiles * 8 * hout * 4)           # f32 stats partials

    kernel = functools.partial(propagate_kernel,
                               hw_resident=hw_resident, tk=tk)

    out, stats = pl.pallas_call(
        kernel,
        out_shape=(jax.ShapeDtypeStruct((npad, hout), jnp.bfloat16),
                   jax.ShapeDtypeStruct((m_tiles * 8, hout), jnp.float32)),
        grid_spec=pltpu.PrefetchScalarGridSpec(
            num_scalar_prefetch=2,
            grid=(m_tiles, kmax),
            in_specs=[
                pl.BlockSpec((tm, tk), lambda i, k, ks, nn: (i, ks[i] + k)),
                hw_spec,
                pl.BlockSpec((1, hout), lambda i, k, ks, nn: (0, 0)),
            ],
            out_specs=[pl.BlockSpec((tm, hout), lambda i, k, ks, nn: (i, 0)),
                       pl.BlockSpec((8, hout), lambda i, k, ks, nn: (i, 0))],
            scratch_shapes=[pltpu.VMEM((tm, hout), jnp.float32)]),
        compiler_params=pltpu.CompilerParams(
            dimension_semantics=("parallel", "arbitrary"),
            vmem_limit_bytes=vmem_limit),
        cost_estimate=pl.CostEstimate(flops=int(flops), transcendentals=0,
                                      bytes_accessed=int(bytes_accessed)),
    )(k_start, n_arr, adj, hw, b)
    return out, stats


def _bn_affine(stats, gamma, beta, n_real, hout, eps=1e-5):
    """Training-mode BN (biased batch variance) folded into scale/shift."""
    parts = stats.reshape(-1, 8, hout)
    s = jnp.sum(parts[:, 0, :], axis=0)
    ss = jnp.sum(parts[:, 1, :], axis=0)
    mu = s / n_real
    var = jnp.maximum(ss / n_real - mu * mu, 0.0)
    inv_std = jax.lax.rsqrt(var + eps)
    scale = gamma[0] * inv_std
    shift = beta[0] - mu * scale
    return (scale[None, :].astype(jnp.float32),
            shift[None, :].astype(jnp.float32))


def _pool_fc(pool, h, scale, shift, wfc, bfc, tm, vmem_limit):
    gpad, npad = pool.shape
    h3p = h.shape[1]
    cpad = wfc.shape[1]
    kt = npad // tm
    return pl.pallas_call(
        pool_fc_kernel,
        out_shape=jax.ShapeDtypeStruct((gpad, cpad), jnp.float32),
        grid=(kt,),
        in_specs=[pl.BlockSpec((gpad, tm), lambda k: (0, k)),
                  pl.BlockSpec((tm, h3p), lambda k: (k, 0)),
                  pl.BlockSpec((1, h3p), lambda k: (0, 0)),
                  pl.BlockSpec((1, h3p), lambda k: (0, 0)),
                  pl.BlockSpec((h3p, cpad), lambda k: (0, 0)),
                  pl.BlockSpec((1, cpad), lambda k: (0, 0))],
        out_specs=pl.BlockSpec((gpad, cpad), lambda k: (0, 0)),
        scratch_shapes=[pltpu.VMEM((gpad, h3p), jnp.float32)],
        compiler_params=pltpu.CompilerParams(
            dimension_semantics=("arbitrary",),
            vmem_limit_bytes=vmem_limit),
    )(pool, h, scale, shift, wfc, bfc)


# ---------------------------------------------------------------------------
# Host-side graph densification / padding helpers
# ---------------------------------------------------------------------------

def _round_up(v, m):
    return ((v + m - 1) // m) * m


def _pick_tile(v):
    if v <= 256:
        return 128
    if v <= 1024:
        return 256
    return 512


def _pad2(a, rows, cols):
    out = jnp.zeros((rows, cols), a.dtype)
    return out.at[:a.shape[0], :a.shape[1]].set(a)


def build_normalized_adj(edge_index, num_nodes):
    """Dense A_hat = D^{-1/2}(A+I)D^{-1/2} (GCNConv default normalization)."""
    src, dst = edge_index
    adj = jnp.zeros((num_nodes, num_nodes), jnp.float32)
    adj = adj.at[dst, src].set(1.0)                       # message src -> dst
    adj = adj + jnp.eye(num_nodes, dtype=jnp.float32)     # self loops
    deg = jnp.sum(adj, axis=1)
    dinv = jnp.where(deg > 0, 1.0 / jnp.sqrt(deg), 0.0)
    return adj * dinv[:, None] * dinv[None, :]


def build_pool_matrix(batch, num_graphs, num_nodes):
    """[G, N] matrix that row-averages node features per graph."""
    onehot = (batch[None, :] == jnp.arange(num_graphs)[:, None]).astype(jnp.float32)
    counts = jnp.maximum(jnp.sum(onehot, axis=1, keepdims=True), 1.0)
    return onehot / counts


def build_row_tile_kranges(batch_np, n, n_pad, tm, tk):
    """Per row-tile: first adjacency column block that can be non-zero.

    Exploits the block-diagonal structure of a batched graph so only the
    column blocks covering the graphs touched by this row tile are streamed.
    Returns (k_start [m_tiles] int32, kmax) with k_start + kmax <= K_total.
    """
    m_tiles = n_pad // tm
    k_total = n_pad // tk
    node_ids = np.arange(n)
    k_start = np.zeros((m_tiles,), np.int32)
    k_need = np.ones((m_tiles,), np.int32)
    for i in range(m_tiles):
        lo, hi = i * tm, min((i + 1) * tm, n)
        if lo >= n:           # row tile is pure padding (zero adjacency rows)
            continue
        graphs_here = np.unique(batch_np[lo:hi])
        sel = np.isin(batch_np, graphs_here)
        c_lo = int(node_ids[sel].min())
        c_hi = int(node_ids[sel].max()) + 1
        k_start[i] = c_lo // tk
        k_need[i] = (c_hi + tk - 1) // tk - k_start[i]
    kmax = max(int(k_need.max()), 1)
    k_start = np.clip(k_start, 0, k_total - kmax).astype(np.int32)
    return jnp.asarray(k_start), kmax


# ---------------------------------------------------------------------------
# Forward pass
# ---------------------------------------------------------------------------

def gcn_model_forward(x, edge_index, batch, params, num_graphs):
    (w1, b1, w2, b2, g1, be1, w3, b3, g2, be2, wfc, bfc) = params
    n, f = x.shape
    c = wfc.shape[1]

    batch_np = np.asarray(batch)
    counts = np.bincount(batch_np, minlength=num_graphs)
    max_g = int(counts.max()) if counts.size else n

    # Row tile grows with total node count (128 -> 256 -> 512); the adjacency
    # column tile is additionally capped by the largest per-graph node span so
    # the block-diagonal column skipping stays effective.
    tm = _pick_tile(n)
    tk = min(tm, _pick_tile(max_g))
    npad = _round_up(max(n, tm), tm)

    fpad = _round_up(f, 128)
    h1p = _round_up(w1.shape[1], 128)
    h2p = _round_up(w2.shape[1], 128)
    h3p = _round_up(w3.shape[1], 128)
    cpad = _round_up(c, 128)
    gpad = _round_up(max(num_graphs, 8), 8)

    vmem_limit = _vmem_limit_bytes()
    # Keep hw resident in VMEM for the propagate only if it comfortably fits
    # alongside the double-buffered adjacency tiles and the accumulator.
    hmax = max(h1p, h2p, h3p)
    hw_resident = (npad * hmax * 2) <= vmem_limit // 4

    # Dense, bf16 adjacency & pooling matrices (the only large operands).
    adj = _pad2(build_normalized_adj(edge_index, n), npad, npad).astype(jnp.bfloat16)
    pool = _pad2(build_pool_matrix(batch, num_graphs, n), gpad, npad).astype(jnp.bfloat16)

    xp = _pad2(x.astype(jnp.float32), npad, fpad)
    n_arr = jnp.array([n], jnp.int32)

    w1p, b1p = _pad2(w1, fpad, h1p).astype(jnp.bfloat16), _pad2(b1, 1, h1p)
    w2p, b2p = _pad2(w2, h1p, h2p).astype(jnp.bfloat16), _pad2(b2, 1, h2p)
    w3p, b3p = _pad2(w3, h2p, h3p).astype(jnp.bfloat16), _pad2(b3, 1, h3p)
    g1p, be1p = _pad2(g1, 1, h2p), _pad2(be1, 1, h2p)
    g2p, be2p = _pad2(g2, 1, h3p), _pad2(be2, 1, h3p)
    wfcp, bfcp = _pad2(wfc, h3p, cpad), _pad2(bfc, 1, cpad)

    k_start, kmax = build_row_tile_kranges(batch_np, n, npad, tm, tk)

    ident_f = (jnp.ones((1, fpad), jnp.float32), jnp.zeros((1, fpad), jnp.float32))
    ident_1 = (jnp.ones((1, h1p), jnp.float32), jnp.zeros((1, h1p), jnp.float32))

    # conv1 + relu
    hw = _xw_affine(xp, ident_f[0], ident_f[1], w1p, tm, vmem_limit)
    h, _ = _propagate(adj, hw, b1p, n_arr, k_start, kmax, tm, tk,
                      vmem_limit, hw_resident)
    # conv2 + relu (BN1 statistics come out of the propagate epilogue)
    hw = _xw_affine(h, ident_1[0], ident_1[1], w2p, tm, vmem_limit)
    h, stats2 = _propagate(adj, hw, b2p, n_arr, k_start, kmax, tm, tk,
                           vmem_limit, hw_resident)
    # batch_norm1 fused into conv3's XW; conv3 + relu (BN2 stats in epilogue)
    scale1, shift1 = _bn_affine(stats2, g1p, be1p, float(n), h2p)
    hw = _xw_affine(h, scale1, shift1, w3p, tm, vmem_limit)
    h, stats3 = _propagate(adj, hw, b3p, n_arr, k_start, kmax, tm, tk,
                           vmem_limit, hw_resident)
    # batch_norm2 fused into global_mean_pool + fc (tiled over node axis)
    scale2, shift2 = _bn_affine(stats3, g2p, be2p, float(n), h3p)
    out = _pool_fc(pool, h, scale2, shift2, wfcp, bfcp, tm, vmem_limit)
    return out[:num_graphs, :c]


# ---------------------------------------------------------------------------
# Parameter init (matches torch defaults used by the reference module)
# ---------------------------------------------------------------------------

def init_params(key, input_dim, hidden_dims, num_classes):
    h1, h2, h3 = hidden_dims
    keys = jax.random.split(key, 8)

    def glorot(k, fan_in, fan_out):
        limit = jnp.sqrt(6.0 / (fan_in + fan_out))
        return jax.random.uniform(k, (fan_in, fan_out), jnp.float32, -limit, limit)

    w1 = glorot(keys[0], input_dim, h1)
    b1 = jnp.zeros((1, h1), jnp.float32)
    w2 = glorot(keys[1], h1, h2)
    b2 = jnp.zeros((1, h2), jnp.float32)
    g1 = jnp.ones((1, h2), jnp.float32)
    be1 = jnp.zeros((1, h2), jnp.float32)
    w3 = glorot(keys[2], h2, h3)
    b3 = jnp.zeros((1, h3), jnp.float32)
    g2 = jnp.ones((1, h3), jnp.float32)
    be2 = jnp.zeros((1, h3), jnp.float32)
    lim = 1.0 / jnp.sqrt(jnp.float32(h3))
    wfc = jax.random.uniform(keys[3], (h3, num_classes), jnp.float32, -lim, lim)
    bfc = jax.random.uniform(keys[4], (1, num_classes), jnp.float32, -lim, lim)
    return (w1, b1, w2, b2, g1, be1, w3, b3, g2, be2, wfc, bfc)


if __name__ == "__main__":
    key = jax.random.PRNGKey(0)
    kx, kp = jax.random.split(key)

    # Small synthetic batch of 2 graphs, 8 nodes each, ring topology.
    input_dim = 8
    hidden_dims = [32, 32, 16]
    num_classes = 4
    nodes_per_graph = 8
    num_graphs = 2
    n = nodes_per_graph * num_graphs

    x = jax.random.normal(kx, (n, input_dim), jnp.float32)

    src_list, dst_list = [], []
    for g in range(num_graphs):
        base = g * nodes_per_graph
        for i in range(nodes_per_graph):
            a = base + i
            b = base + (i + 1) % nodes_per_graph
            src_list += [a, b]
            dst_list += [b, a]
    edge_index = jnp.array([src_list, dst_list], jnp.int32)
    batch = jnp.repeat(jnp.arange(num_graphs, dtype=jnp.int32), nodes_per_graph)

    params = init_params(kp, input_dim, hidden_dims, num_classes)

    out = gcn_model_forward(x, edge_index, batch, params, num_graphs)
    out = jax.block_until_ready(out)
    assert out.shape == (num_graphs, num_classes)
    # TODO(synk): eval-mode BatchNorm (running stats) would need the running
    # mean/var as extra inputs; this matches the reference module's
    # training-mode batch statistics.
    print("KERNEL_OK")
</pallas_src>

<mosaic_0001>
module attributes {stable_mosaic.version = 11 : i64} {
  func.func @xw_affine_kernel(%arg0: i32, %arg1: memref<128x128xf32, #tpu.memory_space<vmem>>, %arg2: memref<1x128xf32, #tpu.memory_space<vmem>>, %arg3: memref<1x128xf32, #tpu.memory_space<vmem>>, %arg4: memref<128x128xbf16, #tpu.memory_space<vmem>>, %arg5: memref<128x128xbf16, #tpu.memory_space<vmem>>) attributes {dimension_semantics = [#tpu.dimension_semantics<parallel>], iteration_bounds = array<i64: 1>, scalar_prefetch = 0 : i64, scratch_operands = 0 : i64, tpu.core_type = #tpu.core_type<tc>, window_params = [{transform_indices = @transform_0, window_bounds = array<i64: 128, 128>}, {pipeline_mode = #tpu.pipeline_mode<synchronous>, transform_indices = @transform_1, window_bounds = array<i64: 1, 128>}, {pipeline_mode = #tpu.pipeline_mode<synchronous>, transform_indices = @transform_2, window_bounds = array<i64: 1, 128>}, {pipeline_mode = #tpu.pipeline_mode<synchronous>, transform_indices = @transform_3, window_bounds = array<i64: 128, 128>}, {transform_indices = @transform_4, window_bounds = array<i64: 128, 128>}]} {
    %c0 = arith.constant 0 : index
    %c0_0 = arith.constant 0 : index
    %0 = vector.load %arg1[%c0, %c0_0] : memref<128x128xf32, #tpu.memory_space<vmem>>, vector<128x128xf32>
    %c0_1 = arith.constant 0 : index
    %c0_2 = arith.constant 0 : index
    %1 = vector.load %arg2[%c0_1, %c0_2] : memref<1x128xf32, #tpu.memory_space<vmem>>, vector<1x128xf32>
    %2 = vector.broadcast %1 : vector<1x128xf32> to vector<128x128xf32>
    %3 = arith.mulf %0, %2 : vector<128x128xf32>
    %c0_3 = arith.constant 0 : index
    %c0_4 = arith.constant 0 : index
    %4 = vector.load %arg3[%c0_3, %c0_4] : memref<1x128xf32, #tpu.memory_space<vmem>>, vector<1x128xf32>
    %5 = vector.broadcast %4 : vector<1x128xf32> to vector<128x128xf32>
    %6 = arith.addf %3, %5 : vector<128x128xf32>
    %7 = arith.truncf %6 : vector<128x128xf32> to vector<128x128xbf16>
    %c0_5 = arith.constant 0 : index
    %c0_6 = arith.constant 0 : index
    %8 = vector.load %arg4[%c0_5, %c0_6] : memref<128x128xbf16, #tpu.memory_space<vmem>>, vector<128x128xbf16>
    %cst = arith.constant dense<0.000000e+00> : vector<128x128xf32>
    %9 = tpu.matmul %7, %8, %cst {dimension_numbers = #tpu.dot_dimension_numbers<[1], [0], [0], [1], [0, 0, 1, 1], [], []>} : vector<128x128xbf16>, vector<128x128xbf16>, vector<128x128xf32> -> vector<128x128xf32>
    %10 = arith.truncf %9 : vector<128x128xf32> to vector<128x128xbf16>
    %c0_7 = arith.constant 0 : index
    %c0_8 = arith.constant 0 : index
    %11 = vector.load %arg5[%c0_7, %c0_8] : memref<128x128xbf16, #tpu.memory_space<vmem>>, vector<128x128xbf16>
    tpu.vector_store %arg5[%c0_7, %c0_8], %10 {strides = array<i32>} : memref<128x128xbf16, #tpu.memory_space<vmem>>, vector<128x128xbf16>,
    return
  }
  func.func @transform_0(%arg0: i32) -> (i32, i32) {
    %c0_i32 = arith.constant 0 : i32
    %c0_i32_0 = arith.constant 0 : i32
    return %arg0, %c0_i32 : i32, i32
  }
  func.func @transform_1(%arg0: i32) -> (i32, i32) {
    %c0_i32 = arith.constant 0 : i32
    %c0_i32_0 = arith.constant 0 : i32
    %c0_i32_1 = arith.constant 0 : i32
    return %c0_i32, %c0_i32_0 : i32, i32
  }
  func.func @transform_2(%arg0: i32) -> (i32, i32) {
    %c0_i32 = arith.constant 0 : i32
    %c0_i32_0 = arith.constant 0 : i32
    %c0_i32_1 = arith.constant 0 : i32
    return %c0_i32, %c0_i32_0 : i32, i32
  }
  func.func @transform_3(%arg0: i32) -> (i32, i32) {
    %c0_i32 = arith.constant 0 : i32
    %c0_i32_0 = arith.constant 0 : i32
    %c0_i32_1 = arith.constant 0 : i32
    return %c0_i32, %c0_i32_0 : i32, i32
  }
  func.func @transform_4(%arg0: i32) -> (i32, i32) {
    %c0_i32 = arith.constant 0 : i32
    %c0_i32_0 = arith.constant 0 : i32
    return %arg0, %c0_i32 : i32, i32
  }
}

</mosaic_0001>

<llo_original>
// kernel: tpu_custom_call.1
$region0: #{tpu_custom_call.1}
  #allocation0 [shape = 'u32[]', space=smem, size = 0x4, offset = 0x4, fixed_abs, tag = 'smem constant byte address 0x4 - core index']
  #allocation1 [shape = 'u32[144,128]{1,0:T(1,128)}', space=vmem, size = 0x12000, scoped, tag = 'internal scratch']
  %s0 = inlined_call_operand.hbm [shape: f32[128,128], index: 0, kind: input, shape index: {}]
  %s1 = inlined_call_operand.vmem [shape: f32[1,128], index: 1, kind: input, shape index: {}]
  %s2 = inlined_call_operand.vmem [shape: f32[1,128], index: 2, kind: input, shape index: {}]
  %s3 = inlined_call_operand.hbm [shape: bf16[128,128], index: 3, kind: input, shape index: {}]
  %s4 = inlined_call_operand.hbm [shape: bf16[128,128], index: 4, kind: output, shape index: {}]
  %s5 = sld [smem:[#allocation0]]
  $region34: #{tpu_custom_call.1} parent=0
    _
  %s7 = ssub.s32 1, %s5
  %s8 = scalar_select 0, %s7, %s5
  $region1: #{tpu_custom_call.1} parent=0
    #allocation2 [shape = 'u8[65536]{0}', space=vmem, size = 0x10000, scoped, tag = 'input window, operand 0, single buffered']
    #allocation3 [shape = 's32[1]{0}', space=sflag, size = 0x4, scoped, tag = 'scoped memory for tpu_custom_call.1']
    #allocation4 [shape = 's32[1]{0}', space=sflag, size = 0x4, scoped, tag = 'scoped memory for tpu_custom_call.1']
    #allocation5 [shape = 'u8[32768]{0}', space=vmem, size = 0x8000, scoped, tag = 'input window, operand 3, single buffered']
    #allocation6 [shape = 's32[1]{0}', space=sflag, size = 0x4, scoped, tag = 'scoped memory for tpu_custom_call.1']
    #allocation7 [shape = 'u8[32768]{0}', space=vmem, size = 0x8000, scoped, tag = 'output window, operand 0, single buffered']
    %9 = vsyncpa [#allocation3], 0
    %10 = vsyncpa [#allocation6], 0
    %11 = vsyncpa [#allocation4], 0
    // Predicated region
    $region2: #{tpu_custom_call.1} parent=1 // pred_check
      _
    $region3: #{tpu_custom_call.1} parent=1 // pred_check_branch
      %13 = sbr.rel (0) target = $region5
    $region4: #{tpu_custom_call.1} parent=1 // pred_region
      %s15 = ssub.s32 2048, 2048
      %16 = vsyncadd [#allocation3], %s15
      %s17 = sshll.u32 [#allocation2], 4
      %s18 = int_to_ptr.vmem [resolvable:$true] %s17
      %23 = dma.hbm_to_vmem [thread:$0]  %s0, 2048, %s18, [#allocation3], 128, 128, 8
    $region5: #{tpu_custom_call.1} parent=1 // pred_fallthru
      _
    // Predicated region
    $region6: #{tpu_custom_call.1} parent=1 // pred_check
      _
    $region7: #{tpu_custom_call.1} parent=1 // pred_check_branch
      %25 = sbr.rel (0) target = $region9
    $region8: #{tpu_custom_call.1} parent=1 // pred_region
      _
    $region9: #{tpu_custom_call.1} parent=1 // pred_fallthru
      _
    // Predicated region
    $region10: #{tpu_custom_call.1} parent=1 // pred_check
      _
    $region11: #{tpu_custom_call.1} parent=1 // pred_check_branch
      %27 = sbr.rel (0) target = $region13
    $region12: #{tpu_custom_call.1} parent=1 // pred_region
      _
    $region13: #{tpu_custom_call.1} parent=1 // pred_fallthru
      _
    // Predicated region
    $region14: #{tpu_custom_call.1} parent=1 // pred_check
      _
    $region15: #{tpu_custom_call.1} parent=1 // pred_check_branch
      %29 = sbr.rel (0) target = $region17
    $region16: #{tpu_custom_call.1} parent=1 // pred_region
      %s31 = ssub.s32 1024, 1024
      %32 = vsyncadd [#allocation6], %s31
      %s33 = sshll.u32 [#allocation5], 4
      %s34 = int_to_ptr.vmem [resolvable:$true] %s33
      %39 = dma.hbm_to_vmem [thread:$0]  %s3, 1024, %s34, [#allocation6], 64, 64, 4
    $region17: #{tpu_custom_call.1} parent=1 // pred_fallthru
      _
    // Predicated region
    $region18: #{tpu_custom_call.1} parent=1 // pred_check
      _
    $region19: #{tpu_custom_call.1} parent=1 // pred_check_branch
      %41 = sbr.rel (0) target = $region21
    $region20: #{tpu_custom_call.1} parent=1 // pred_region
      %42 = dma.done [#allocation3], 2048
    $region21: #{tpu_custom_call.1} parent=1 // pred_fallthru
      _
    // Predicated region
    $region22: #{tpu_custom_call.1} parent=1 // pred_check
      _
    $region23: #{tpu_custom_call.1} parent=1 // pred_check_branch
      %44 = sbr.rel (0) target = $region25
    $region24: #{tpu_custom_call.1} parent=1 // pred_region
      %45 = dma.done [#allocation6], 1024
    $region25: #{tpu_custom_call.1} parent=1 // pred_fallthru
      _
    %v47 = vld [vmem:[#allocation2] sm:$0xff]
    %v48 = vld [vmem:[#allocation2 + $0x8] sm:$0xff]
    %v49 = vld [vmem:[#allocation2 + $0x10] sm:$0xff]
    %v50 = vld [vmem:[#allocation2 + $0x18] sm:$0xff]
    %v51 = vld [vmem:[#allocation2 + $0x20] sm:$0xff]
    %v52 = vld [vmem:[#allocation2 + $0x28] sm:$0xff]
    %v53 = vld [vmem:[#allocation2 + $0x30] sm:$0xff]
    %v54 = vld [vmem:[#allocation2 + $0x38] sm:$0xff]
    %v55 = vld [vmem:[#allocation2 + $0x40] sm:$0xff]
    %v56 = vld [vmem:[#allocation2 + $0x48] sm:$0xff]
    %v57 = vld [vmem:[#allocation2 + $0x50] sm:$0xff]
    %v58 = vld [vmem:[#allocation2 + $0x58] sm:$0xff]
    %v59 = vld [vmem:[#allocation2 + $0x60] sm:$0xff]
    %v60 = vld [vmem:[#allocation2 + $0x68] sm:$0xff]
    %v61 = vld [vmem:[#allocation2 + $0x70] sm:$0xff]
    %v62 = vld [vmem:[#allocation2 + $0x78] sm:$0xff]
    %v63 = vld [vmem:[%s1] sm:$0x1]
    %v65 = vlaneseq
    %v66 = vshrl.u32 %v65, 7
    %v67 = vsub.s32 0, %v66
    %v68 = vrot.slane %v63, %v67
    %v70 = vmul.f32 %v47, %v68
    %v71 = vmul.f32 %v48, %v68
    %v72 = vmul.f32 %v49, %v68
    %v73 = vmul.f32 %v50, %v68
    %v74 = vmul.f32 %v51, %v68
    %v75 = vmul.f32 %v52, %v68
    %v76 = vmul.f32 %v53, %v68
    %v77 = vmul.f32 %v54, %v68
    %v78 = vmul.f32 %v55, %v68
    %v79 = vmul.f32 %v56, %v68
    %v80 = vmul.f32 %v57, %v68
    %v81 = vmul.f32 %v58, %v68
    %v82 = vmul.f32 %v59, %v68
    %v83 = vmul.f32 %v60, %v68
    %v84 = vmul.f32 %v61, %v68
    %v85 = vmul.f32 %v62, %v68
    %v86 = vld [vmem:[%s2] sm:$0x1]
    %v88 = vlaneseq
    %v89 = vshrl.u32 %v88, 7
    %v90 = vsub.s32 0, %v89
    %v91 = vrot.slane %v86, %v90
    %v93 = vadd.f32 %v70, %v91
    %v94 = vadd.f32 %v71, %v91
    %v95 = vadd.f32 %v72, %v91
    %v96 = vadd.f32 %v73, %v91
    %v97 = vadd.f32 %v74, %v91
    %v98 = vadd.f32 %v75, %v91
    %v99 = vadd.f32 %v76, %v91
    %v100 = vadd.f32 %v77, %v91
    %v101 = vadd.f32 %v78, %v91
    %v102 = vadd.f32 %v79, %v91
    %v103 = vadd.f32 %v80, %v91
    %v104 = vadd.f32 %v81, %v91
    %v105 = vadd.f32 %v82, %v91
    %v106 = vadd.f32 %v83, %v91
    %v107 = vadd.f32 %v84, %v91
    %v108 = vadd.f32 %v85, %v91
    %v109 = vpack.c.bf16 %v94, %v93
    %v110 = vpack.c.bf16 %v96, %v95
    %v111 = vpack.c.bf16 %v98, %v97
    %v112 = vpack.c.bf16 %v100, %v99
    %v113 = vpack.c.bf16 %v102, %v101
    %v114 = vpack.c.bf16 %v104, %v103
    %v115 = vpack.c.bf16 %v106, %v105
    %v116 = vpack.c.bf16 %v108, %v107
    %v117 = vld [vmem:[#allocation5] sm:$0xf]
    %v118 = vld [vmem:[#allocation5 + $0x4] sm:$0xf]
    %v119 = vld [vmem:[#allocation5 + $0x8] sm:$0xf]
    %v120 = vld [vmem:[#allocation5 + $0xc] sm:$0xf]
    %v121 = vld [vmem:[#allocation5 + $0x10] sm:$0xf]
    %v122 = vld [vmem:[#allocation5 + $0x14] sm:$0xf]
    %v123 = vld [vmem:[#allocation5 + $0x18] sm:$0xf]
    %v124 = vld [vmem:[#allocation5 + $0x1c] sm:$0xf]
    %v125 = vld [vmem:[#allocation5 + $0x20] sm:$0xf]
    %v126 = vld [vmem:[#allocation5 + $0x24] sm:$0xf]
    %v127 = vld [vmem:[#allocation5 + $0x28] sm:$0xf]
    %v128 = vld [vmem:[#allocation5 + $0x2c] sm:$0xf]
    %v129 = vld [vmem:[#allocation5 + $0x30] sm:$0xf]
    %v130 = vld [vmem:[#allocation5 + $0x34] sm:$0xf]
    %v131 = vld [vmem:[#allocation5 + $0x38] sm:$0xf]
    %v132 = vld [vmem:[#allocation5 + $0x3c] sm:$0xf]
    %v149 = vunpack.c.l.b16 %v117
    %v150 = vunpack.c.l.b16 %v118
    %v151 = vunpack.c.l.b16 %v119
    %v152 = vunpack.c.l.b16 %v120
    %v153 = vunpack.c.l.b16 %v121
    %v154 = vunpack.c.l.b16 %v122
    %v155 = vunpack.c.l.b16 %v123
    %v156 = vunpack.c.l.b16 %v124
    %v157 = vunpack.c.l.b16 %v125
    %v158 = vunpack.c.l.b16 %v126
    %v159 = vunpack.c.l.b16 %v127
    %v160 = vunpack.c.l.b16 %v128
    %v161 = vunpack.c.l.b16 %v129
    %v162 = vunpack.c.l.b16 %v130
    %v163 = vunpack.c.l.b16 %v131
    %v164 = vunpack.c.l.b16 %v132
    %v165 = vpack.c.b16 %v150, %v149
    %v166 = vpack.c.b16 %v152, %v151
    %v167 = vpack.c.b16 %v154, %v153
    %v168 = vpack.c.b16 %v156, %v155
    %v169 = vpack.c.b16 %v158, %v157
    %v170 = vpack.c.b16 %v160, %v159
    %v171 = vpack.c.b16 %v162, %v161
    %v172 = vpack.c.b16 %v164, %v163
    %181 = vmatprep.subr.bf16.mxu0 0
    %182 = vmatpush1.bf16.msra.mxu0 %v172
    %183 = vmatprep.subr.bf16.mxu0 0
    %184 = vmatpush1.bf16.msra.mxu0 %v171
    %185 = vmatprep.subr.bf16.mxu0 0
    %186 = vmatpush1.bf16.msra.mxu0 %v170
    %187 = vmatprep.subr.bf16.mxu0 0
    %188 = vmatpush1.bf16.msra.mxu0 %v169
    %189 = vmatprep.subr.bf16.mxu0 0
    %190 = vmatpush1.bf16.msra.mxu0 %v168
    %191 = vmatprep.subr.bf16.mxu0 0
    %192 = vmatpush1.bf16.msra.mxu0 %v167
    %193 = vmatprep.subr.bf16.mxu0 0
    %194 = vmatpush1.bf16.msra.mxu0 %v166
    %195 = vmatprep.subr.bf16.mxu0 0
    %196 = vmatpush1.bf16.msra.mxu0 %v165
    %197 = vmatprep.subr.bf16.mxu0 0
    %198 = vmatpush2.bf16.msra.mxu0 0
    %199 = vmatprep.subr.bf16.mxu0 0
    %200 = vmatpush2.bf16.msra.mxu0 0
    %201 = vmatprep.subr.bf16.mxu0 0
    %202 = vmatpush2.bf16.msra.mxu0 0
    %203 = vmatprep.subr.bf16.mxu0 0
    %204 = vmatpush2.bf16.msra.mxu0 0
    %205 = vmatprep.subr.bf16.mxu0 0
    %206 = vmatpush2.bf16.msra.mxu0 0
    %207 = vmatprep.subr.bf16.mxu0 0
    %208 = vmatpush2.bf16.msra.mxu0 0
    %209 = vmatprep.subr.bf16.mxu0 0
    %210 = vmatpush2.bf16.msra.mxu0 0
    %211 = vmatprep.subr.bf16.mxu0 0
    %212 = vmatpush2.bf16.msra.mxu0 0
    %213 = vmatprep.mubr.bf16.mxu0 0
    %214 = vmatmul.mubr.bf16.gmra.mxu0 %v109
    %v215 = vpop.f32.mrf.mxu0
    %v216 = vadd.f32 0.0, %v215
    %v217 = vpop.f32.mrf.mxu0
    %v218 = vpop.f32.mrf.mxu0
    %v219 = vadd.f32 0.0, %v218
    %v220 = vpop.f32.mrf.mxu0
    %221 = vmatprep.mubr.bf16.mxu0 0
    %222 = vmatmul.mubr.bf16.gmra.mxu0 %v110
    %v223 = vpop.f32.mrf.mxu0
    %v224 = vadd.f32 0.0, %v223
    %v225 = vpop.f32.mrf.mxu0
    %v226 = vpop.f32.mrf.mxu0
    %v227 = vadd.f32 0.0, %v226
    %v228 = vpop.f32.mrf.mxu0
    %229 = vmatprep.mubr.bf16.mxu0 0
    %230 = vmatmul.mubr.bf16.gmra.mxu0 %v111
    %v231 = vpop.f32.mrf.mxu0
    %v232 = vadd.f32 0.0, %v231
    %v233 = vpop.f32.mrf.mxu0
    %v234 = vpop.f32.mrf.mxu0
    %v235 = vadd.f32 0.0, %v234
    %v236 = vpop.f32.mrf.mxu0
    %237 = vmatprep.mubr.bf16.mxu0 0
    %238 = vmatmul.mubr.bf16.gmra.mxu0 %v112
    %v239 = vpop.f32.mrf.mxu0
    %v240 = vadd.f32 0.0, %v239
    %v241 = vpop.f32.mrf.mxu0
    %v242 = vpop.f32.mrf.mxu0
    %v243 = vadd.f32 0.0, %v242
    %v244 = vpop.f32.mrf.mxu0
    %245 = vmatprep.mubr.bf16.mxu0 0
    %246 = vmatmul.mubr.bf16.gmra.mxu0 %v113
    %v247 = vpop.f32.mrf.mxu0
    %v248 = vadd.f32 0.0, %v247
    %v249 = vpop.f32.mrf.mxu0
    %v250 = vpop.f32.mrf.mxu0
    %v251 = vadd.f32 0.0, %v250
    %v252 = vpop.f32.mrf.mxu0
    %253 = vmatprep.mubr.bf16.mxu0 0
    %254 = vmatmul.mubr.bf16.gmra.mxu0 %v114
    %v255 = vpop.f32.mrf.mxu0
    %v256 = vadd.f32 0.0, %v255
    %v257 = vpop.f32.mrf.mxu0
    %v258 = vpop.f32.mrf.mxu0
    %v259 = vadd.f32 0.0, %v258
    %v260 = vpop.f32.mrf.mxu0
    %261 = vmatprep.mubr.bf16.mxu0 0
    %262 = vmatmul.mubr.bf16.gmra.mxu0 %v115
    %v263 = vpop.f32.mrf.mxu0
    %v264 = vadd.f32 0.0, %v263
    %v265 = vpop.f32.mrf.mxu0
    %v266 = vpop.f32.mrf.mxu0
    %v267 = vadd.f32 0.0, %v266
    %v268 = vpop.f32.mrf.mxu0
    %269 = vmatprep.mubr.bf16.mxu0 0
    %270 = vmatmul.mubr.bf16.gmra.mxu0 %v116
    %v271 = vpop.f32.mrf.mxu0
    %v272 = vadd.f32 0.0, %v271
    %v273 = vpop.f32.mrf.mxu0
    %v274 = vpop.f32.mrf.mxu0
    %v275 = vadd.f32 0.0, %v274
    %v276 = vpop.f32.mrf.mxu0
    %277 = vdwg.mxu0
    %v278 = vpack.c.bf16 %v219, %v216
    %v279 = vpack.c.bf16 %v227, %v224
    %v280 = vpack.c.bf16 %v235, %v232
    %v281 = vpack.c.bf16 %v243, %v240
    %v282 = vpack.c.bf16 %v251, %v248
    %v283 = vpack.c.bf16 %v259, %v256
    %v284 = vpack.c.bf16 %v267, %v264
    %v285 = vpack.c.bf16 %v275, %v272
    %v294 = vunpack.c.l.b16 %v278
    %v295 = vunpack.c.h.b16 %v278
    %v296 = vunpack.c.l.b16 %v279
    %v297 = vunpack.c.h.b16 %v279
    %v298 = vunpack.c.l.b16 %v280
    %v299 = vunpack.c.h.b16 %v280
    %v300 = vunpack.c.l.b16 %v281
    %v301 = vunpack.c.h.b16 %v281
    %v302 = vunpack.c.l.b16 %v282
    %v303 = vunpack.c.h.b16 %v282
    %v304 = vunpack.c.l.b16 %v283
    %v305 = vunpack.c.h.b16 %v283
    %v306 = vunpack.c.l.b16 %v284
    %v307 = vunpack.c.h.b16 %v284
    %v308 = vunpack.c.l.b16 %v285
    %v309 = vunpack.c.h.b16 %v285
    %v310 = vpack.c.b16 %v294, %v294
    %v311 = vpack.c.b16 %v295, %v295
    %v312 = vpack.c.b16 %v296, %v296
    %v313 = vpack.c.b16 %v297, %v297
    %v314 = vpack.c.b16 %v298, %v298
    %v315 = vpack.c.b16 %v299, %v299
    %v316 = vpack.c.b16 %v300, %v300
    %v317 = vpack.c.b16 %v301, %v301
    %v318 = vpack.c.b16 %v302, %v302
    %v319 = vpack.c.b16 %v303, %v303
    %v320 = vpack.c.b16 %v304, %v304
    %v321 = vpack.c.b16 %v305, %v305
    %v322 = vpack.c.b16 %v306, %v306
    %v323 = vpack.c.b16 %v307, %v307
    %v324 = vpack.c.b16 %v308, %v308
    %v325 = vpack.c.b16 %v309, %v309
    %342 = vst [vmem:[#allocation7] sm:$0xf] %v310
    %343 = vst [vmem:[#allocation7 + $0x4] sm:$0xf] %v311
    %344 = vst [vmem:[#allocation7 + $0x8] sm:$0xf] %v312
    %345 = vst [vmem:[#allocation7 + $0xc] sm:$0xf] %v313
    %346 = vst [vmem:[#allocation7 + $0x10] sm:$0xf] %v314
    %347 = vst [vmem:[#allocation7 + $0x14] sm:$0xf] %v315
    %348 = vst [vmem:[#allocation7 + $0x18] sm:$0xf] %v316
    %349 = vst [vmem:[#allocation7 + $0x1c] sm:$0xf] %v317
    %350 = vst [vmem:[#allocation7 + $0x20] sm:$0xf] %v318
    %351 = vst [vmem:[#allocation7 + $0x24] sm:$0xf] %v319
    %352 = vst [vmem:[#allocation7 + $0x28] sm:$0xf] %v320
    %353 = vst [vmem:[#allocation7 + $0x2c] sm:$0xf] %v321
    %354 = vst [vmem:[#allocation7 + $0x30] sm:$0xf] %v322
    %355 = vst [vmem:[#allocation7 + $0x34] sm:$0xf] %v323
    %356 = vst [vmem:[#allocation7 + $0x38] sm:$0xf] %v324
    %357 = vst [vmem:[#allocation7 + $0x3c] sm:$0xf] %v325
    // Predicated region
    $region26: #{tpu_custom_call.1} parent=1 // pred_check
      _
    $region27: #{tpu_custom_call.1} parent=1 // pred_check_branch
      %359 = sbr.rel (0) target = $region29
    $region28: #{tpu_custom_call.1} parent=1 // pred_region
      %s361 = ssub.s32 1024, 1024
      %362 = vsyncadd [#allocation4], %s361
      %s363 = sshll.u32 [#allocation7], 4
      %s364 = int_to_ptr.vmem [resolvable:$true] %s363
      %369 = dma.vmem_to_hbm [thread:$0]  %s364, 1024, %s4, [#allocation4], 64, 64, 4
    $region29: #{tpu_custom_call.1} parent=1 // pred_fallthru
      _
    // Predicated region
    $region30: #{tpu_custom_call.1} parent=1 // pred_check
      _
    $region31: #{tpu_custom_call.1} parent=1 // pred_check_branch
      %371 = sbr.rel (0) target = $region33
    $region32: #{tpu_custom_call.1} parent=1 // pred_region
      %372 = dma.done [#allocation4], 1024
    $region33: #{tpu_custom_call.1} parent=1 // pred_fallthru
      _
    %373 = vsyncpa [#allocation3], 1
    %374 = vsyncpa [#allocation6], 1
    %375 = vsyncpa [#allocation4], 1

</llo_original>
